<compile_context>
chip_gen: v7x
topology: tpu7x:2x2x1
jax: 0.10.0
libtpu: 0.0.40
codegen_flags: <defaults>
</compile_context>

<pallas_src>
import jax
import jax.numpy as jnp
from jax.experimental import pallas as pl
from jax.experimental.pallas import tpu as pltpu


def _drop_path_kernel(x_ref, scale_ref, o_ref):
    # scale_ref: (rows, 1) f32, broadcasts over the (rows, tile_l) tile.
    o_ref[...] = (x_ref[...] * scale_ref[...]).astype(o_ref.dtype)


def _round_up(a, m):
    return ((a + m - 1) // m) * m


def drop_path_pallas(x, key, drop_prob=0.0, training=True):
    """Pallas DropPath. `key` drives the per-sample uniform draw."""
    if drop_prob is None or drop_prob == 0.0 or not training:
        return x

    keep_prob = 1.0 - float(drop_prob)
    if keep_prob <= 0.0:
        # All paths dropped; timm guards the division by zero the same way.
        return jnp.zeros_like(x)

    orig_shape = x.shape
    B = x.shape[0]
    xf = x.reshape(B, -1)
    L = xf.shape[1]

    # Per-sample scale, computed once in f32:  {0, 1/keep_prob} per sample.
    r = jax.random.uniform(key, (B,), dtype=jnp.float32)
    scale = (jnp.floor(keep_prob + r) * (1.0 / keep_prob)).reshape(B, 1)

    # --- sublane folding: make the row dim a multiple of 8 when B is small ---
    S = 1
    for cand in (1, 2, 4, 8):
        if (B * cand) % 8 == 0 and L % cand == 0:
            S = cand
            break
    rows = B * S
    Lr = L // S
    xr = xf.reshape(rows, Lr)
    # Row i of xr belongs to sample i // S -> repeat the scale S times.
    scale_r = jnp.repeat(scale, S, axis=0)  # (rows, 1), f32

    # --- lane-dense, VMEM-budgeted tiling ---
    LANE = 128
    itemsize = jnp.dtype(x.dtype).itemsize
    lr128 = _round_up(Lr, LANE)

    budget = 12 * 1024 * 1024                       # conservative across v5e/v6e/v7x
    max_lanes = budget // (4 * rows * itemsize)     # ~4 buffers: dbl-buffered in + out
    max_lanes = max(LANE, (max_lanes // LANE) * LANE)
    if max_lanes >= 512:
        max_lanes = (max_lanes // 512) * 512        # 512+ lane tiles ~ 85% HBM roofline
    tile_l = min(lr128, max_lanes)

    Lp = _round_up(lr128, tile_l)                   # pad so the grid divides exactly
    if Lp != Lr:
        xr = jnp.pad(xr, ((0, 0), (0, Lp - Lr)))
    grid = (Lp // tile_l,)

    out = pl.pallas_call(
        _drop_path_kernel,
        out_shape=jax.ShapeDtypeStruct((rows, Lp), x.dtype),
        grid=grid,
        in_specs=[
            pl.BlockSpec((rows, tile_l), lambda j: (0, j)),
            pl.BlockSpec((rows, 1), lambda j: (0, 0)),   # resident across the grid
        ],
        out_specs=pl.BlockSpec((rows, tile_l), lambda j: (0, j)),
        compiler_params=pltpu.CompilerParams(
            dimension_semantics=("parallel",)),
    )(xr, scale_r)

    if Lp != Lr:
        out = out[:, :Lr]
    return out.reshape(orig_shape)


if __name__ == "__main__":
    key = jax.random.PRNGKey(0)
    kx, kr, kx2 = jax.random.split(key, 3)

    # Small NCHW-like input consistent with a ViT/conv residual branch.
    B, C, H, W = 2, 4, 16, 16
    x = jax.random.normal(kx, (B, C, H, W), dtype=jnp.float32)
    drop_prob = 0.25
    keep_prob = 1.0 - drop_prob

    # Kernel (training=True path exercises the Pallas compute).
    y = drop_path_pallas(x, kr, drop_prob=drop_prob, training=True)
    y = jax.block_until_ready(y)

    # Pure-JAX reference with the identical random draw / scale math.
    r_ref = jax.random.uniform(kr, (B,), dtype=jnp.float32)
    scale_ref = (jnp.floor(keep_prob + r_ref) * (1.0 / keep_prob)).reshape(B, 1, 1, 1)
    y_ref = x * scale_ref

    assert y.shape == x.shape and y.dtype == x.dtype
    assert jnp.allclose(y, y_ref, atol=1e-6, rtol=1e-6)

    # Awkward (non-128-multiple, non-foldable) shape: exercises lane padding path.
    x2 = jax.random.normal(kx2, (2, 3, 5, 7), dtype=jnp.float32)
    y2 = jax.block_until_ready(
        drop_path_pallas(x2, kr, drop_prob=drop_prob, training=True))
    r2 = jax.random.uniform(kr, (2,), dtype=jnp.float32)
    s2 = (jnp.floor(keep_prob + r2) * (1.0 / keep_prob)).reshape(2, 1, 1, 1)
    assert jnp.allclose(y2, x2 * s2, atol=1e-6, rtol=1e-6)

    # Eval / drop_prob==0 path must be the identity (matches PyTorch).
    y_eval = drop_path_pallas(x, kr, drop_prob=drop_prob, training=False)
    assert jnp.array_equal(jax.block_until_ready(y_eval), x)
    y_zero = drop_path_pallas(x, kr, drop_prob=0.0, training=True)
    assert jnp.array_equal(jax.block_until_ready(y_zero), x)

    # drop_prob == 1.0 guard: everything dropped -> zeros (no NaN/div-by-zero).
    y_all = jax.block_until_ready(
        drop_path_pallas(x, kr, drop_prob=1.0, training=True))
    assert jnp.array_equal(y_all, jnp.zeros_like(x))

    print("KERNEL_OK")
</pallas_src>

<mosaic_0001>
module attributes {stable_mosaic.version = 11 : i64} {
  func.func @_drop_path_kernel(%arg0: i32, %arg1: memref<8x256xf32, #tpu.memory_space<vmem>>, %arg2: memref<8x1xf32, #tpu.memory_space<vmem>>, %arg3: memref<8x256xf32, #tpu.memory_space<vmem>>) attributes {dimension_semantics = [#tpu.dimension_semantics<parallel>], iteration_bounds = array<i64: 1>, scalar_prefetch = 0 : i64, scratch_operands = 0 : i64, tpu.core_type = #tpu.core_type<tc>, window_params = [{transform_indices = @transform_0, window_bounds = array<i64: 8, 256>}, {pipeline_mode = #tpu.pipeline_mode<synchronous>, transform_indices = @transform_1, window_bounds = array<i64: 8, 1>}, {transform_indices = @transform_2, window_bounds = array<i64: 8, 256>}]} {
    %c0 = arith.constant 0 : index
    %c0_0 = arith.constant 0 : index
    %0 = vector.load %arg1[%c0, %c0_0] : memref<8x256xf32, #tpu.memory_space<vmem>>, vector<8x256xf32>
    %c0_1 = arith.constant 0 : index
    %c0_2 = arith.constant 0 : index
    %1 = vector.load %arg2[%c0_1, %c0_2] : memref<8x1xf32, #tpu.memory_space<vmem>>, vector<8x1xf32>
    %2 = vector.broadcast %1 : vector<8x1xf32> to vector<8x256xf32>
    %3 = arith.mulf %0, %2 : vector<8x256xf32>
    %c0_3 = arith.constant 0 : index
    %c0_4 = arith.constant 0 : index
    %4 = vector.load %arg3[%c0_3, %c0_4] : memref<8x256xf32, #tpu.memory_space<vmem>>, vector<8x256xf32>
    tpu.vector_store %arg3[%c0_3, %c0_4], %3 {strides = array<i32>} : memref<8x256xf32, #tpu.memory_space<vmem>>, vector<8x256xf32>,
    return
  }
  func.func @transform_0(%arg0: i32) -> (i32, i32) {
    %c0_i32 = arith.constant 0 : i32
    %c0_i32_0 = arith.constant 0 : i32
    return %c0_i32, %arg0 : i32, i32
  }
  func.func @transform_1(%arg0: i32) -> (i32, i32) {
    %c0_i32 = arith.constant 0 : i32
    %c0_i32_0 = arith.constant 0 : i32
    %c0_i32_1 = arith.constant 0 : i32
    return %c0_i32, %c0_i32_0 : i32, i32
  }
  func.func @transform_2(%arg0: i32) -> (i32, i32) {
    %c0_i32 = arith.constant 0 : i32
    %c0_i32_0 = arith.constant 0 : i32
    return %c0_i32, %arg0 : i32, i32
  }
}

</mosaic_0001>

<llo_original>
// kernel: tpu_custom_call.1
$region0: #{tpu_custom_call.1}
  #allocation0 [shape = 'u32[]', space=smem, size = 0x4, offset = 0x4, fixed_abs, tag = 'smem constant byte address 0x4 - core index']
  #allocation1 [shape = 'u32[144,128]{1,0:T(1,128)}', space=vmem, size = 0x12000, scoped, tag = 'internal scratch']
  %s0 = inlined_call_operand.hbm [shape: f32[8,256], index: 0, kind: input, shape index: {}]
  %s1 = inlined_call_operand.vmem [shape: f32[8,1], index: 1, kind: input, shape index: {}]
  %s2 = inlined_call_operand.hbm [shape: f32[8,256], index: 2, kind: output, shape index: {}]
  %s3 = sld [smem:[#allocation0]]
  $region22: #{tpu_custom_call.1} parent=0
    _
  %s5 = ssub.s32 1, %s3
  %s6 = scalar_select 0, %s5, %s3
  $region1: #{tpu_custom_call.1} parent=0
    #allocation2 [shape = 'u8[8192]{0}', space=vmem, size = 0x2000, scoped, tag = 'input window, operand 0, single buffered']
    #allocation3 [shape = 's32[1]{0}', space=sflag, size = 0x4, scoped, tag = 'scoped memory for tpu_custom_call.1']
    #allocation4 [shape = 's32[1]{0}', space=sflag, size = 0x4, scoped, tag = 'scoped memory for tpu_custom_call.1']
    #allocation5 [shape = 'u8[8192]{0}', space=vmem, size = 0x2000, scoped, tag = 'output window, operand 0, single buffered']
    %7 = vsyncpa [#allocation3], 0
    %8 = vsyncpa [#allocation4], 0
    // Predicated region
    $region2: #{tpu_custom_call.1} parent=1 // pred_check
      _
    $region3: #{tpu_custom_call.1} parent=1 // pred_check_branch
      %10 = sbr.rel (0) target = $region5
    $region4: #{tpu_custom_call.1} parent=1 // pred_region
      %s12 = ssub.s32 256, 256
      %13 = vsyncadd [#allocation3], %s12
      %s15 = sshll.u32 [#allocation2], 4
      %s16 = int_to_ptr.vmem [resolvable:$true] %s15
      %18 = dma.hbm_to_vmem [thread:$0]  %s0, 256, %s16, [#allocation3]
    $region5: #{tpu_custom_call.1} parent=1 // pred_fallthru
      _
    // Predicated region
    $region6: #{tpu_custom_call.1} parent=1 // pred_check
      _
    $region7: #{tpu_custom_call.1} parent=1 // pred_check_branch
      %20 = sbr.rel (0) target = $region9
    $region8: #{tpu_custom_call.1} parent=1 // pred_region
      _
    $region9: #{tpu_custom_call.1} parent=1 // pred_fallthru
      _
    // Predicated region
    $region10: #{tpu_custom_call.1} parent=1 // pred_check
      _
    $region11: #{tpu_custom_call.1} parent=1 // pred_check_branch
      %22 = sbr.rel (0) target = $region13
    $region12: #{tpu_custom_call.1} parent=1 // pred_region
      %23 = dma.done [#allocation3], 256
    $region13: #{tpu_custom_call.1} parent=1 // pred_fallthru
      _
    %v24 = vld [vmem:[#allocation2] sm:$0xff]
    %v25 = vld [vmem:[#allocation2 + $0x8] sm:$0xff]
    %v26 = vld [vmem:[%s1] sm:$0xff]
    %28 = vset.pattern.permute.xlu0 0
    %29 = vperm.xlu0 %28, %v26
    %v30 = vpop.permute.xlu0 %29
    %v32 = vmul.f32 %v24, %v30
    %v33 = vmul.f32 %v25, %v30
    %34 = vst [vmem:[#allocation5] sm:$0xff] %v32
    %35 = vst [vmem:[#allocation5 + $0x8] sm:$0xff] %v33
    // Predicated region
    $region14: #{tpu_custom_call.1} parent=1 // pred_check
      _
    $region15: #{tpu_custom_call.1} parent=1 // pred_check_branch
      %37 = sbr.rel (0) target = $region17
    $region16: #{tpu_custom_call.1} parent=1 // pred_region
      %s39 = ssub.s32 256, 256
      %40 = vsyncadd [#allocation4], %s39
      %s42 = sshll.u32 [#allocation5], 4
      %s43 = int_to_ptr.vmem [resolvable:$true] %s42
      %45 = dma.vmem_to_hbm [thread:$0]  %s43, 256, %s2, [#allocation4]
    $region17: #{tpu_custom_call.1} parent=1 // pred_fallthru
      _
    // Predicated region
    $region18: #{tpu_custom_call.1} parent=1 // pred_check
      _
    $region19: #{tpu_custom_call.1} parent=1 // pred_check_branch
      %47 = sbr.rel (0) target = $region21
    $region20: #{tpu_custom_call.1} parent=1 // pred_region
      %48 = dma.done [#allocation4], 256
    $region21: #{tpu_custom_call.1} parent=1 // pred_fallthru
      _
    %49 = vsyncpa [#allocation3], 1
    %50 = vsyncpa [#allocation4], 1

</llo_original>
